<compile_context>
chip_gen: v6e
topology: v6e:2x2x1
jax: 0.10.0
libtpu: 0.0.40
codegen_flags: <defaults>
</compile_context>

<pallas_src>
import functools

import jax
import jax.numpy as jnp
from jax.experimental import pallas as pl
from jax.experimental.pallas import tpu as pltpu


def temporal_block_kernel(xpad_ref, w1_ref, w2_ref, wd_ref, shifts_ref,
                          out_ref, col_ref, *, kernel_size, dilation, pad,
                          l_valid, has_downsample):
  """One batch tile per grid step.

  xpad_ref : (BT, Lp, Cin)    zero-padded input (halo + sublane alignment)
  w1_ref   : (K, Cin, Cp)     conv1 weights, BN1 scale folded, Cout padded
  w2_ref   : (K*Cp, Cp)       conv2 weights, BN2 scale folded, im2col layout
  wd_ref   : (Cin, Cp)        1x1 downsample weights (unused if identity res)
  shifts   : (3, Cp) f32      rows: [BN1 shift, BN2 shift, downsample bias]
  out_ref  : (BT, L8, Cp) f32 output (padded L / channels; sliced in wrapper)
  col_ref  : (BT, L8, K*Cp)   VMEM scratch holding the conv2 im2col matrix
  """
  k = kernel_size
  bt, lp, cin = xpad_ref.shape
  _, l8, cp = out_ref.shape
  cdt = col_ref.dtype

  shifts = shifts_ref[...]                                    # (3, Cp) f32

  # ---- conv1 (dilated) + folded BN1 scale: K accumulating matmuls ----
  y1 = jnp.zeros((bt * l8, cp), jnp.float32)
  for t in range(k):
    xs = xpad_ref[:, t * dilation:t * dilation + l8, :].reshape(bt * l8, cin)
    y1 = y1 + jnp.dot(xs, w1_ref[t], preferred_element_type=jnp.float32)
  h1 = jnp.maximum(y1 + shifts[0:1, :], 0.0).reshape(bt, l8, cp)
  # Rows past the true sequence length must act as zero padding for conv2.
  if l_valid < l8:
    row = jax.lax.broadcasted_iota(jnp.int32, (1, l8, 1), 1)
    h1 = jnp.where(row < l_valid, h1, 0.0)
  h1c = h1.astype(cdt)
  # dropout1: identity in eval mode.

  # ---- conv2 im2col written directly into the lane-blocked scratch ----
  # col[:, i, t*Cp:(t+1)*Cp] = h1[:, i + t*dil - pad]  (zero out of range)
  for t in range(k):
    s = t * dilation - pad
    lo, hi = t * cp, (t + 1) * cp
    if s < 0:
      col_ref[:, 0:-s, lo:hi] = jnp.zeros((bt, -s, cp), cdt)
      col_ref[:, -s:l8, lo:hi] = h1c[:, 0:l8 + s, :]
    elif s > 0:
      col_ref[:, l8 - s:l8, lo:hi] = jnp.zeros((bt, s, cp), cdt)
      col_ref[:, 0:l8 - s, lo:hi] = h1c[:, s:l8, :]
    else:
      col_ref[:, :, lo:hi] = h1c
  y2 = jnp.dot(col_ref[...].reshape(bt * l8, k * cp), w2_ref[...],
               preferred_element_type=jnp.float32)
  h2 = jnp.maximum(y2 + shifts[1:2, :], 0.0)                  # BN2 shift + ReLU
  # dropout2: identity in eval mode.

  # ---- residual branch ----
  x_core = xpad_ref[:, pad:pad + l8, :].reshape(bt * l8, cin)
  if has_downsample:
    res = jnp.dot(x_core, wd_ref[...], preferred_element_type=jnp.float32)
    res = res + shifts[2:3, :]
  else:
    # Identity residual: no matmul, just lane-pad x to Cp on the VPU.
    res = x_core.astype(jnp.float32)
    if cp > cin:
      res = jnp.concatenate(
          [res, jnp.zeros((bt * l8, cp - cin), jnp.float32)], axis=-1)

  out_ref[...] = jnp.maximum(h2 + res, 0.0).reshape(bt, l8, cp)


def _vmem_limit_bytes():
  """Generation-aware scoped-VMEM limit (v5e/v6e: 128 MiB cap, v7x: 64 MiB)."""
  cap = 64 * 1024 * 1024
  try:
    cap = int(getattr(pltpu.get_tpu_info(), "vmem_capacity_bytes", cap))
  except Exception:
    pass
  return min((cap * 3) // 4, 96 * 1024 * 1024)


def _pick_batch_tile(n, l8, lp, c_in, cp, k, cbytes, vmem_limit):
  """Largest divisor of n whose per-step footprint fits the VMEM budget while
  leaving >= 4 grid steps when possible (>= 2 per TensorCore on v7x)."""
  if n <= 1:
    return 1
  # Fixed (double-buffered) weight/shift tiles.
  fixed = 2 * ((k * c_in * cp + k * cp * cp + c_in * cp) * cbytes + 3 * cp * 4)
  # Per-batch-element per-step footprint: double-buffered input + f32 output
  # tiles, the im2col scratch, and the f32 temporaries (y1 / h1 / y2 / out).
  per_b = (2 * lp * c_in * cbytes + 2 * l8 * cp * 4
           + l8 * k * cp * cbytes + 4 * l8 * cp * 4)
  budget = int(vmem_limit * 0.7) - fixed
  max_bt = max(1, budget // per_b)
  target_steps = min(n, 4)
  best = 0
  for d in range(1, n + 1):
    if n % d == 0 and d <= max_bt and n // d >= target_steps:
      best = max(best, d)
  if best == 0:
    for d in range(1, n + 1):
      if n % d == 0 and d <= max_bt:
        best = max(best, d)
  return max(best, 1)


def temporal_block_pallas(x_ncl, params, *, kernel_size, dilation, padding,
                          compute_dtype=jnp.bfloat16, batch_tile=None):
  """x_ncl: (N, Cin, L) float32 (PyTorch Conv1d layout). Returns (N, Cout, L)."""
  n, c_in, l = x_ncl.shape
  c_out = params["w1"].shape[0]
  k = kernel_size
  assert params["w1"].shape[2] == k
  assert 2 * padding == dilation * (k - 1), (
      "TemporalBlock residual add requires 2*padding == dilation*(K-1)")
  eps = 1e-5
  l8 = ((l + 7) // 8) * 8                        # sublane-aligned seq length
  lp = l8 + 2 * padding
  cp = ((c_out + 127) // 128) * 128              # lane-dense padded channels
  cbytes = jnp.dtype(compute_dtype).itemsize
  has_downsample = params.get("wd") is not None

  vmem_limit = _vmem_limit_bytes()
  if batch_tile is None:
    batch_tile = _pick_batch_tile(n, l8, lp, c_in, cp, k, cbytes, vmem_limit)
  assert n % batch_tile == 0
  grid_n = n // batch_tile

  # ---- glue: layout + zero padding (conv halo + sublane alignment) ----
  x_nlc = jnp.transpose(x_ncl, (0, 2, 1))                       # (N, L, Cin)
  xpad = jnp.pad(x_nlc, ((0, 0), (padding, padding + (l8 - l)), (0, 0)))
  xpad = xpad.astype(compute_dtype)                             # (N, Lp, Cin)

  # ---- fold conv bias + BN (eval) into weight scale and per-channel shift --
  sc1 = params["g1"] / jnp.sqrt(params["v1"] + eps)
  sc2 = params["g2"] / jnp.sqrt(params["v2"] + eps)
  sh1 = (params["b1"] - params["m1"]) * sc1 + params["be1"]
  sh2 = (params["b2"] - params["m2"]) * sc2 + params["be2"]

  w1 = jnp.transpose(params["w1"], (2, 1, 0)) * sc1[None, None, :]  # (K,Cin,Co)
  w1 = jnp.pad(w1, ((0, 0), (0, 0), (0, cp - c_out)))               # (K,Cin,Cp)

  w2 = jnp.transpose(params["w2"], (2, 1, 0)) * sc2[None, None, :]  # (K,Co,Co)
  w2 = jnp.pad(w2, ((0, 0), (0, cp - c_out), (0, cp - c_out)))      # (K,Cp,Cp)
  w2 = w2.reshape(k * cp, cp)                                       # im2col

  if has_downsample:
    wd = jnp.transpose(params["wd"][:, :, 0], (1, 0))               # (Cin,Co)
    bd = params["bd"]
  else:
    # Module: downsample is None when n_inputs == n_outputs -> res = x.
    assert c_in == c_out, "identity residual requires Cin == Cout"
    wd = jnp.zeros((c_in, c_out), jnp.float32)    # unused in the kernel
    bd = jnp.zeros((c_out,), jnp.float32)
  wd = jnp.pad(wd, ((0, 0), (0, cp - c_out)))                       # (Cin,Cp)

  shifts = jnp.stack([
      jnp.pad(sh1, (0, cp - c_out)),
      jnp.pad(sh2, (0, cp - c_out)),
      jnp.pad(bd, (0, cp - c_out)),
  ]).astype(jnp.float32)                                            # (3,Cp)

  w1 = w1.astype(compute_dtype)
  w2 = w2.astype(compute_dtype)
  wd = wd.astype(compute_dtype)

  kernel = functools.partial(
      temporal_block_kernel, kernel_size=k, dilation=dilation, pad=padding,
      l_valid=l, has_downsample=has_downsample)

  out_nlc = pl.pallas_call(
      kernel,
      out_shape=jax.ShapeDtypeStruct((n, l8, cp), jnp.float32),
      grid_spec=pltpu.PrefetchScalarGridSpec(
          num_scalar_prefetch=0,
          grid=(grid_n,),
          in_specs=[
              pl.BlockSpec((batch_tile, lp, c_in), lambda b: (b, 0, 0)),
              pl.BlockSpec((k, c_in, cp), lambda b: (0, 0, 0)),
              pl.BlockSpec((k * cp, cp), lambda b: (0, 0)),
              pl.BlockSpec((c_in, cp), lambda b: (0, 0)),
              pl.BlockSpec((3, cp), lambda b: (0, 0)),
          ],
          out_specs=pl.BlockSpec((batch_tile, l8, cp), lambda b: (b, 0, 0)),
          scratch_shapes=[pltpu.VMEM((batch_tile, l8, k * cp), compute_dtype)],
      ),
      compiler_params=pltpu.CompilerParams(
          dimension_semantics=("parallel",),
          vmem_limit_bytes=vmem_limit),
  )(xpad, w1, w2, wd, shifts)

  out = out_nlc[:, :l, :c_out]                     # drop L / channel padding
  return jnp.transpose(out, (0, 2, 1))             # back to (N, Cout, L)


def temporal_block_reference(x_ncl, params, *, dilation, padding):
  """Pure-JAX reference (eval-mode BN, no dropout), NCL layout like PyTorch."""
  eps = 1e-5

  def conv1d(x, w, b, pad, dil):
    y = jax.lax.conv_general_dilated(
        x, w, window_strides=(1,), padding=[(pad, pad)],
        rhs_dilation=(dil,), dimension_numbers=("NCH", "OIH", "NCH"))
    return y + b[None, :, None]

  def bn(x, g, be, m, v):
    return (x - m[None, :, None]) / jnp.sqrt(v[None, :, None] + eps) \
        * g[None, :, None] + be[None, :, None]

  h = conv1d(x_ncl, params["w1"], params["b1"], padding, dilation)
  h = jax.nn.relu(bn(h, params["g1"], params["be1"], params["m1"], params["v1"]))
  h = conv1d(h, params["w2"], params["b2"], padding, dilation)
  h = jax.nn.relu(bn(h, params["g2"], params["be2"], params["m2"], params["v2"]))
  if params.get("wd") is not None:
    res = conv1d(x_ncl, params["wd"], params["bd"], 0, 1)
  else:
    res = x_ncl
  return jax.nn.relu(h + res)


def make_params(key, c_in, c_out, k):
  """Random TemporalBlock parameters (downsample present iff c_in != c_out)."""
  ks = jax.random.split(key, 12)
  p = {
      "w1": jax.random.normal(ks[0], (c_out, c_in, k), jnp.float32) * 0.1,
      "b1": jax.random.normal(ks[1], (c_out,), jnp.float32) * 0.1,
      "w2": jax.random.normal(ks[2], (c_out, c_out, k), jnp.float32) * 0.1,
      "b2": jax.random.normal(ks[3], (c_out,), jnp.float32) * 0.1,
      "g1": jax.random.uniform(ks[6], (c_out,), jnp.float32, 0.5, 1.5),
      "be1": jax.random.normal(ks[7], (c_out,), jnp.float32) * 0.1,
      "m1": jax.random.normal(ks[8], (c_out,), jnp.float32) * 0.1,
      "v1": jax.random.uniform(ks[9], (c_out,), jnp.float32, 0.5, 1.5),
      "g2": jax.random.uniform(ks[10], (c_out,), jnp.float32, 0.5, 1.5),
      "be2": jax.random.normal(ks[11], (c_out,), jnp.float32) * 0.1,
      "m2": jax.random.normal(ks[5], (c_out,), jnp.float32) * 0.1,
      "v2": jax.random.uniform(ks[4], (c_out,), jnp.float32, 0.5, 1.5),
  }
  if c_in != c_out:
    kd = jax.random.split(ks[0], 2)
    p["wd"] = jax.random.normal(kd[0], (c_out, c_in, 1), jnp.float32) * 0.1
    p["bd"] = jax.random.normal(kd[1], (c_out,), jnp.float32) * 0.1
  else:
    p["wd"] = None
    p["bd"] = None
  return p


if __name__ == "__main__":
  # Small shapes implied by the module: Conv1d over (N, C, L).
  N, C_IN, C_OUT, L = 2, 4, 8, 16
  KERNEL_SIZE, DILATION = 3, 1
  PADDING = DILATION * (KERNEL_SIZE - 1) // 2

  params = make_params(jax.random.PRNGKey(0), C_IN, C_OUT, KERNEL_SIZE)
  x = jax.random.normal(jax.random.PRNGKey(42), (N, C_IN, L), jnp.float32)
  ref = temporal_block_reference(x, params, dilation=DILATION, padding=PADDING)
  ref = jax.block_until_ready(ref)

  # --- default path: bf16 MXU operands, f32 accumulation / elementwise ---
  out_bf16 = jax.block_until_ready(temporal_block_pallas(
      x, params, kernel_size=KERNEL_SIZE, dilation=DILATION, padding=PADDING))
  assert out_bf16.shape == (N, C_OUT, L), out_bf16.shape
  assert jnp.allclose(out_bf16, ref, atol=5e-2, rtol=5e-2), \
      float(jnp.max(jnp.abs(out_bf16 - ref)))

  # --- f32 MXU path: tight tolerance ---
  out_f32 = jax.block_until_ready(temporal_block_pallas(
      x, params, kernel_size=KERNEL_SIZE, dilation=DILATION, padding=PADDING,
      compute_dtype=jnp.float32))
  assert jnp.allclose(out_f32, ref, atol=2e-4, rtol=2e-4), \
      float(jnp.max(jnp.abs(out_f32 - ref)))

  # --- identity-residual case (Cin == Cout -> downsample is None), dilation=2
  C2, K2, DIL2 = 8, 3, 2
  PAD2 = DIL2 * (K2 - 1) // 2
  params2 = make_params(jax.random.PRNGKey(1), C2, C2, K2)
  x2 = jax.random.normal(jax.random.PRNGKey(7), (N, C2, L), jnp.float32)
  out2 = jax.block_until_ready(temporal_block_pallas(
      x2, params2, kernel_size=K2, dilation=DIL2, padding=PAD2,
      compute_dtype=jnp.float32))
  ref2 = temporal_block_reference(x2, params2, dilation=DIL2, padding=PAD2)
  assert out2.shape == (N, C2, L), out2.shape
  assert jnp.allclose(out2, ref2, atol=2e-4, rtol=2e-4), \
      float(jnp.max(jnp.abs(out2 - ref2)))

  # --- L not a multiple of 8 (exercises the sublane-alignment padding) ---
  L3 = 12
  x3 = jax.random.normal(jax.random.PRNGKey(9), (N, C_IN, L3), jnp.float32)
  out3 = jax.block_until_ready(temporal_block_pallas(
      x3, params, kernel_size=KERNEL_SIZE, dilation=DILATION, padding=PADDING,
      compute_dtype=jnp.float32))
  ref3 = temporal_block_reference(x3, params, dilation=DILATION,
                                  padding=PADDING)
  assert out3.shape == (N, C_OUT, L3), out3.shape
  assert jnp.allclose(out3, ref3, atol=2e-4, rtol=2e-4), \
      float(jnp.max(jnp.abs(out3 - ref3)))

  print("KERNEL_OK")
</pallas_src>

<mosaic_0001>
module attributes {stable_mosaic.version = 11 : i64} {
  func.func @temporal_block_kernel(%arg0: i32, %arg1: memref<1x18x4xbf16, #tpu.memory_space<vmem>>, %arg2: memref<3x4x128xbf16, #tpu.memory_space<vmem>>, %arg3: memref<384x128xbf16, #tpu.memory_space<vmem>>, %arg4: memref<4x128xbf16, #tpu.memory_space<vmem>>, %arg5: memref<3x128xf32, #tpu.memory_space<vmem>>, %arg6: memref<1x16x128xf32, #tpu.memory_space<vmem>>, %arg7: memref<1x16x384xbf16, #tpu.memory_space<vmem>>) attributes {dimension_semantics = [#tpu.dimension_semantics<parallel>], iteration_bounds = array<i64: 2>, scalar_prefetch = 0 : i64, scratch_operands = 1 : i64, tpu.core_type = #tpu.core_type<tc>, window_params = [{transform_indices = @transform_0, window_bounds = array<i64: 1, 18, 4>}, {pipeline_mode = #tpu.pipeline_mode<synchronous>, transform_indices = @transform_1, window_bounds = array<i64: 3, 4, 128>}, {pipeline_mode = #tpu.pipeline_mode<synchronous>, transform_indices = @transform_2, window_bounds = array<i64: 384, 128>}, {pipeline_mode = #tpu.pipeline_mode<synchronous>, transform_indices = @transform_3, window_bounds = array<i64: 4, 128>}, {pipeline_mode = #tpu.pipeline_mode<synchronous>, transform_indices = @transform_4, window_bounds = array<i64: 3, 128>}, {transform_indices = @transform_5, window_bounds = array<i64: 1, 16, 128>}]} {
    %c0 = arith.constant 0 : index
    %c0_0 = arith.constant 0 : index
    %0 = vector.load %arg5[%c0, %c0_0] : memref<3x128xf32, #tpu.memory_space<vmem>>, vector<3x128xf32>
    %cst = arith.constant 0.000000e+00 : f32
    %1 = vector.broadcast %cst : f32 to vector<16x128xf32>
    %c0_1 = arith.constant 0 : index
    %c0_2 = arith.constant 0 : index
    %c0_3 = arith.constant 0 : index
    %2 = vector.load %arg1[%c0_1, %c0_2, %c0_3] : memref<1x18x4xbf16, #tpu.memory_space<vmem>>, vector<1x16x4xbf16>
    %3 = vector.shape_cast %2 : vector<1x16x4xbf16> to vector<16x4xbf16>
    %c0_4 = arith.constant 0 : index
    %c0_5 = arith.constant 0 : index
    %c0_6 = arith.constant 0 : index
    %4 = vector.load %arg2[%c0_4, %c0_5, %c0_6] : memref<3x4x128xbf16, #tpu.memory_space<vmem>>, vector<1x4x128xbf16>
    %5 = vector.shape_cast %4 : vector<1x4x128xbf16> to vector<4x128xbf16>
    %cst_7 = arith.constant dense<0.000000e+00> : vector<16x128xf32>
    %6 = tpu.matmul %3, %5, %cst_7 {dimension_numbers = #tpu.dot_dimension_numbers<[1], [0], [0], [1], [0, 0, 1, 1], [], []>} : vector<16x4xbf16>, vector<4x128xbf16>, vector<16x128xf32> -> vector<16x128xf32>
    %7 = arith.addf %1, %6 : vector<16x128xf32>
    %c0_8 = arith.constant 0 : index
    %c1 = arith.constant 1 : index
    %c0_9 = arith.constant 0 : index
    %8 = vector.load %arg1[%c0_8, %c1, %c0_9] : memref<1x18x4xbf16, #tpu.memory_space<vmem>>, vector<1x16x4xbf16>
    %9 = vector.shape_cast %8 : vector<1x16x4xbf16> to vector<16x4xbf16>
    %c1_10 = arith.constant 1 : index
    %c0_11 = arith.constant 0 : index
    %c0_12 = arith.constant 0 : index
    %10 = vector.load %arg2[%c1_10, %c0_11, %c0_12] : memref<3x4x128xbf16, #tpu.memory_space<vmem>>, vector<1x4x128xbf16>
    %11 = vector.shape_cast %10 : vector<1x4x128xbf16> to vector<4x128xbf16>
    %cst_13 = arith.constant dense<0.000000e+00> : vector<16x128xf32>
    %12 = tpu.matmul %9, %11, %cst_13 {dimension_numbers = #tpu.dot_dimension_numbers<[1], [0], [0], [1], [0, 0, 1, 1], [], []>} : vector<16x4xbf16>, vector<4x128xbf16>, vector<16x128xf32> -> vector<16x128xf32>
    %13 = arith.addf %7, %12 : vector<16x128xf32>
    %c0_14 = arith.constant 0 : index
    %c2 = arith.constant 2 : index
    %c0_15 = arith.constant 0 : index
    %14 = vector.load %arg1[%c0_14, %c2, %c0_15] : memref<1x18x4xbf16, #tpu.memory_space<vmem>>, vector<1x16x4xbf16>
    %15 = vector.shape_cast %14 : vector<1x16x4xbf16> to vector<16x4xbf16>
    %c2_16 = arith.constant 2 : index
    %c0_17 = arith.constant 0 : index
    %c0_18 = arith.constant 0 : index
    %16 = vector.load %arg2[%c2_16, %c0_17, %c0_18] : memref<3x4x128xbf16, #tpu.memory_space<vmem>>, vector<1x4x128xbf16>
    %17 = vector.shape_cast %16 : vector<1x4x128xbf16> to vector<4x128xbf16>
    %cst_19 = arith.constant dense<0.000000e+00> : vector<16x128xf32>
    %18 = tpu.matmul %15, %17, %cst_19 {dimension_numbers = #tpu.dot_dimension_numbers<[1], [0], [0], [1], [0, 0, 1, 1], [], []>} : vector<16x4xbf16>, vector<4x128xbf16>, vector<16x128xf32> -> vector<16x128xf32>
    %19 = arith.addf %13, %18 : vector<16x128xf32>
    %20 = vector.extract_strided_slice %0 {offsets = [0, 0], sizes = [1, 128], strides = [1, 1]} : vector<3x128xf32> to vector<1x128xf32>
    %21 = vector.broadcast %20 : vector<1x128xf32> to vector<16x128xf32>
    %22 = arith.addf %19, %21 : vector<16x128xf32>
    %cst_20 = arith.constant 0.000000e+00 : f32
    %23 = vector.broadcast %cst_20 : f32 to vector<16x128xf32>
    %24 = arith.maximumf %22, %23 : vector<16x128xf32>
    %25 = vector.shape_cast %24 : vector<16x128xf32> to vector<1x16x128xf32>
    %26 = arith.truncf %25 : vector<1x16x128xf32> to vector<1x16x128xbf16>
    %cst_21 = arith.constant 0.000000e+00 : bf16
    %27 = vector.broadcast %cst_21 : bf16 to vector<1x1x128xbf16>
    %c0_22 = arith.constant 0 : index
    %c0_23 = arith.constant 0 : index
    %c0_24 = arith.constant 0 : index
    %28 = vector.load %arg7[%c0_22, %c0_23, %c0_24] : memref<1x16x384xbf16, #tpu.memory_space<vmem>>, vector<1x1x128xbf16>
    tpu.vector_store %arg7[%c0_22, %c0_23, %c0_24], %27 {strides = array<i32>} : memref<1x16x384xbf16, #tpu.memory_space<vmem>>, vector<1x1x128xbf16>,
    %29 = vector.extract_strided_slice %26 {offsets = [0, 0, 0], sizes = [1, 15, 128], strides = [1, 1, 1]} : vector<1x16x128xbf16> to vector<1x15x128xbf16>
    %c0_25 = arith.constant 0 : index
    %c1_26 = arith.constant 1 : index
    %c0_27 = arith.constant 0 : index
    %30 = vector.load %arg7[%c0_25, %c1_26, %c0_27] : memref<1x16x384xbf16, #tpu.memory_space<vmem>>, vector<1x15x128xbf16>
    tpu.vector_store %arg7[%c0_25, %c1_26, %c0_27], %29 {strides = array<i32>} : memref<1x16x384xbf16, #tpu.memory_space<vmem>>, vector<1x15x128xbf16>,
    %c0_28 = arith.constant 0 : index
    %c0_29 = arith.constant 0 : index
    %c128 = arith.constant 128 : index
    %31 = vector.load %arg7[%c0_28, %c0_29, %c128] : memref<1x16x384xbf16, #tpu.memory_space<vmem>>, vector<1x16x128xbf16>
    tpu.vector_store %arg7[%c0_28, %c0_29, %c128], %26 {strides = array<i32>} : memref<1x16x384xbf16, #tpu.memory_space<vmem>>, vector<1x16x128xbf16>,
    %cst_30 = arith.constant 0.000000e+00 : bf16
    %32 = vector.broadcast %cst_30 : bf16 to vector<1x1x128xbf16>
    %c0_31 = arith.constant 0 : index
    %c15 = arith.constant 15 : index
    %c256 = arith.constant 256 : index
    %33 = vector.load %arg7[%c0_31, %c15, %c256] : memref<1x16x384xbf16, #tpu.memory_space<vmem>>, vector<1x1x128xbf16>
    tpu.vector_store %arg7[%c0_31, %c15, %c256], %32 {strides = array<i32>} : memref<1x16x384xbf16, #tpu.memory_space<vmem>>, vector<1x1x128xbf16>,
    %34 = vector.extract_strided_slice %26 {offsets = [0, 1, 0], sizes = [1, 15, 128], strides = [1, 1, 1]} : vector<1x16x128xbf16> to vector<1x15x128xbf16>
    %c0_32 = arith.constant 0 : index
    %c0_33 = arith.constant 0 : index
    %c256_34 = arith.constant 256 : index
    %35 = vector.load %arg7[%c0_32, %c0_33, %c256_34] : memref<1x16x384xbf16, #tpu.memory_space<vmem>>, vector<1x15x128xbf16>
    tpu.vector_store %arg7[%c0_32, %c0_33, %c256_34], %34 {strides = array<i32>} : memref<1x16x384xbf16, #tpu.memory_space<vmem>>, vector<1x15x128xbf16>,
    %c0_35 = arith.constant 0 : index
    %c0_36 = arith.constant 0 : index
    %c0_37 = arith.constant 0 : index
    %36 = vector.load %arg7[%c0_35, %c0_36, %c0_37] : memref<1x16x384xbf16, #tpu.memory_space<vmem>>, vector<1x16x384xbf16>
    %37 = vector.shape_cast %36 : vector<1x16x384xbf16> to vector<16x384xbf16>
    %c0_38 = arith.constant 0 : index
    %c0_39 = arith.constant 0 : index
    %38 = vector.load %arg3[%c0_38, %c0_39] : memref<384x128xbf16, #tpu.memory_space<vmem>>, vector<384x128xbf16>
    %cst_40 = arith.constant dense<0.000000e+00> : vector<16x128xf32>
    %39 = tpu.matmul %37, %38, %cst_40 {dimension_numbers = #tpu.dot_dimension_numbers<[1], [0], [0], [1], [0, 0, 1, 1], [], []>} : vector<16x384xbf16>, vector<384x128xbf16>, vector<16x128xf32> -> vector<16x128xf32>
    %40 = vector.extract_strided_slice %0 {offsets = [1, 0], sizes = [1, 128], strides = [1, 1]} : vector<3x128xf32> to vector<1x128xf32>
    %41 = vector.broadcast %40 : vector<1x128xf32> to vector<16x128xf32>
    %42 = arith.addf %39, %41 : vector<16x128xf32>
    %cst_41 = arith.constant 0.000000e+00 : f32
    %43 = vector.broadcast %cst_41 : f32 to vector<16x128xf32>
    %44 = arith.maximumf %42, %43 : vector<16x128xf32>
    %c0_42 = arith.constant 0 : index
    %c1_43 = arith.constant 1 : index
    %c0_44 = arith.constant 0 : index
    %45 = vector.load %arg1[%c0_42, %c1_43, %c0_44] : memref<1x18x4xbf16, #tpu.memory_space<vmem>>, vector<1x16x4xbf16>
    %46 = vector.shape_cast %45 : vector<1x16x4xbf16> to vector<16x4xbf16>
    %c0_45 = arith.constant 0 : index
    %c0_46 = arith.constant 0 : index
    %47 = vector.load %arg4[%c0_45, %c0_46] : memref<4x128xbf16, #tpu.memory_space<vmem>>, vector<4x128xbf16>
    %cst_47 = arith.constant dense<0.000000e+00> : vector<16x128xf32>
    %48 = tpu.matmul %46, %47, %cst_47 {dimension_numbers = #tpu.dot_dimension_numbers<[1], [0], [0], [1], [0, 0, 1, 1], [], []>} : vector<16x4xbf16>, vector<4x128xbf16>, vector<16x128xf32> -> vector<16x128xf32>
    %49 = vector.extract_strided_slice %0 {offsets = [2, 0], sizes = [1, 128], strides = [1, 1]} : vector<3x128xf32> to vector<1x128xf32>
    %50 = vector.broadcast %49 : vector<1x128xf32> to vector<16x128xf32>
    %51 = arith.addf %48, %50 : vector<16x128xf32>
    %52 = arith.addf %44, %51 : vector<16x128xf32>
    %cst_48 = arith.constant 0.000000e+00 : f32
    %53 = vector.broadcast %cst_48 : f32 to vector<16x128xf32>
    %54 = arith.maximumf %52, %53 : vector<16x128xf32>
    %55 = vector.shape_cast %54 : vector<16x128xf32> to vector<1x16x128xf32>
    %c0_49 = arith.constant 0 : index
    %c0_50 = arith.constant 0 : index
    %c0_51 = arith.constant 0 : index
    %56 = vector.load %arg6[%c0_49, %c0_50, %c0_51] : memref<1x16x128xf32, #tpu.memory_space<vmem>>, vector<1x16x128xf32>
    tpu.vector_store %arg6[%c0_49, %c0_50, %c0_51], %55 {strides = array<i32>} : memref<1x16x128xf32, #tpu.memory_space<vmem>>, vector<1x16x128xf32>,
    return
  }
  func.func @transform_0(%arg0: i32) -> (i32, i32, i32) {
    %c0_i32 = arith.constant 0 : i32
    %c0_i32_0 = arith.constant 0 : i32
    %c0_i32_1 = arith.constant 0 : i32
    return %arg0, %c0_i32, %c0_i32_0 : i32, i32, i32
  }
  func.func @transform_1(%arg0: i32) -> (i32, i32, i32) {
    %c0_i32 = arith.constant 0 : i32
    %c0_i32_0 = arith.constant 0 : i32
    %c0_i32_1 = arith.constant 0 : i32
    %c0_i32_2 = arith.constant 0 : i32
    return %c0_i32, %c0_i32_0, %c0_i32_1 : i32, i32, i32
  }
  func.func @transform_2(%arg0: i32) -> (i32, i32) {
    %c0_i32 = arith.constant 0 : i32
    %c0_i32_0 = arith.constant 0 : i32
    %c0_i32_1 = arith.constant 0 : i32
    return %c0_i32, %c0_i32_0 : i32, i32
  }
  func.func @transform_3(%arg0: i32) -> (i32, i32) {
    %c0_i32 = arith.constant 0 : i32
    %c0_i32_0 = arith.constant 0 : i32
    %c0_i32_1 = arith.constant 0 : i32
    return %c0_i32, %c0_i32_0 : i32, i32
  }
  func.func @transform_4(%arg0: i32) -> (i32, i32) {
    %c0_i32 = arith.constant 0 : i32
    %c0_i32_0 = arith.constant 0 : i32
    %c0_i32_1 = arith.constant 0 : i32
    return %c0_i32, %c0_i32_0 : i32, i32
  }
  func.func @transform_5(%arg0: i32) -> (i32, i32, i32) {
    %c0_i32 = arith.constant 0 : i32
    %c0_i32_0 = arith.constant 0 : i32
    %c0_i32_1 = arith.constant 0 : i32
    return %arg0, %c0_i32, %c0_i32_0 : i32, i32, i32
  }
}

</mosaic_0001>

<llo_original>
// kernel: tpu_custom_call.1
$region0: #{tpu_custom_call.1}
  #allocation0 [shape = 'u32[]', space=smem, size = 0x4, offset = 0x4, fixed_abs, tag = 'smem constant byte address 0x4 - core index']
  #allocation1 [shape = 'u32[144,128]{1,0:T(1,128)}', space=vmem, size = 0x12000, scoped, tag = 'internal scratch']
  #allocation2 [shape = 'bf16[1,16,384]{2,1,0:T(8,128)(2,1)}', space=vmem, size = 0x3000, scoped, tag = 'scratch operand']
  %s0 = inlined_call_operand.vmem [shape: bf16[2,18,4], index: 0, kind: input, shape index: {}]
  %s1 = inlined_call_operand.vmem [shape: bf16[3,4,128], index: 1, kind: input, shape index: {}]
  %s2 = inlined_call_operand.hbm [shape: bf16[384,128], index: 2, kind: input, shape index: {}]
  %s3 = inlined_call_operand.vmem [shape: bf16[4,128], index: 3, kind: input, shape index: {}]
  %s4 = inlined_call_operand.vmem [shape: f32[3,128], index: 4, kind: input, shape index: {}]
  %s5 = inlined_call_operand.hbm [shape: f32[2,16,128], index: 5, kind: output, shape index: {}]
  %s6 = sld [smem:[#allocation0]]
  $region57: #{tpu_custom_call.1} parent=0
    _
  %s8 = ssub.s32 1, %s6
  %s9 = scalar_select 0, %s8, %s6
  $region1: #{tpu_custom_call.1} parent=0
    #allocation3 [shape = 'u8[98304]{0}', space=vmem, size = 0x18000, scoped, tag = 'input window, operand 2, single buffered']
    #allocation4 [shape = 's32[2]{0}', space=sflag, size = 0x8, scoped, tag = 'scoped memory for tpu_custom_call.1']
    #allocation5 [shape = 's32[2]{0}', space=sflag, size = 0x8, scoped, tag = 'scoped memory for tpu_custom_call.1']
    #allocation6 [shape = 'u8[16384]{0}', space=vmem, size = 0x4000, scoped, tag = 'output window, operand 0']
    %10 = vsyncpa [#allocation4], 0
    %11 = vsyncpa [#allocation5], 0
    %s12 = scalar_lea.sflag [#allocation5], 1
    %13 = vsyncpa %s12, 0
    loop: start=0, step=1, limit=4
    $region2: #{tpu_custom_call.1} parent=1 // loop_pre_header
      _
    $region3: #{tpu_custom_call.1} parent=1 // loop_header
      %s15 = sphi 0, %s19
      %p16 = scmp.ge.s32.totalorder %s15, 4
      %s25 = sphi 0, %s27
      %s28 = sphi 0, %s25
      %s29 = sphi 0, %s28
      %s45 = sphi 0, %s29
      %s49 = sphi 0, %s49
      %s51 = sphi 0, %s49
      %s52 = sphi 0, %s51
      %s66 = sphi 0, %s52
      %s70 = sphi 0, %s70
      %s72 = sphi 0, %s70
      %s73 = sphi 0, %s72
      %s87 = sphi 0, %s73
      %s91 = sphi 0, %s91
      %s93 = sphi 0, %s91
      %s94 = sphi 0, %s93
      %s108 = sphi 0, %s94
      %s112 = sphi 0, %s112
      %s114 = sphi 0, %s112
      %s115 = sphi 0, %s114
      %s129 = sphi 0, %s115
      %s135 = sphi 0, %s137
      %s138 = sphi 0, %s135
      %s139 = sphi 0, %s138
      %s155 = sphi 0, %s139
    $region4: #{tpu_custom_call.1} parent=1 // loop_header_branch
      %18 = sbr.rel (%p16) target = $region8
    $region5: #{tpu_custom_call.1} parent=1 // loop_body
      %s20 = ssub.s32 %s15, 1
      %s21 = ssub.s32 %s15, 2
      %s22 = sadd.s32 %s15, 1
      %s23 = ssub.s32 %s15, %s22
      %p24 = scmp.eq.s32.totalorder %s23, 0
      %s26 = sadd.s32 %s25, 1
      %s27 = scalar_select %p24, %s25, %s26
      %p30 = pneg %p24
      %p31 = scmp.eq.s32.totalorder %s15, 1
      %p32 = por %p30, %p31
      %p33 = scmp.ne.s32.totalorder %s25, %s28
      %p34 = scmp.eq.s32.totalorder %s15, 0
      %p35 = por %p33, %p34
      %p36 = scmp.ne.s32.totalorder %s25, %s28
      %p37 = scmp.eq.s32.totalorder %s20, 1
      %p38 = por %p36, %p37
      %p39 = scmp.ne.s32.totalorder %s28, %s29
      %p40 = scmp.eq.s32.totalorder %s20, 0
      %p41 = por %p39, %p40
      %p42 = scmp.ne.s32.totalorder %s28, %s29
      %p43 = scmp.eq.s32.totalorder %s21, 1
      %p44 = por %p42, %p43
      %p46 = scmp.ne.s32.totalorder %s29, %s45
      %p47 = scmp.eq.s32.totalorder %s21, 0
      %p48 = por %p46, %p47
      %s50 = sadd.s32 %s49, 1
      %p53 = scmp.eq.s32.totalorder %s15, 1
      %p54 = scmp.ne.s32.totalorder %s49, %s51
      %p55 = scmp.eq.s32.totalorder %s15, 0
      %p56 = por %p54, %p55
      %p57 = scmp.ne.s32.totalorder %s49, %s51
      %p58 = scmp.eq.s32.totalorder %s20, 1
      %p59 = por %p57, %p58
      %p60 = scmp.ne.s32.totalorder %s51, %s52
      %p61 = scmp.eq.s32.totalorder %s20, 0
      %p62 = por %p60, %p61
      %p63 = scmp.ne.s32.totalorder %s51, %s52
      %p64 = scmp.eq.s32.totalorder %s21, 1
      %p65 = por %p63, %p64
      %p67 = scmp.ne.s32.totalorder %s52, %s66
      %p68 = scmp.eq.s32.totalorder %s21, 0
      %p69 = por %p67, %p68
      %s71 = sadd.s32 %s70, 1
      %p74 = scmp.eq.s32.totalorder %s15, 1
      %p75 = scmp.ne.s32.totalorder %s70, %s72
      %p76 = scmp.eq.s32.totalorder %s15, 0
      %p77 = por %p75, %p76
      %p78 = scmp.ne.s32.totalorder %s70, %s72
      %p79 = scmp.eq.s32.totalorder %s20, 1
      %p80 = por %p78, %p79
      %p81 = scmp.ne.s32.totalorder %s72, %s73
      %p82 = scmp.eq.s32.totalorder %s20, 0
      %p83 = por %p81, %p82
      %p84 = scmp.ne.s32.totalorder %s72, %s73
      %p85 = scmp.eq.s32.totalorder %s21, 1
      %p86 = por %p84, %p85
      %p88 = scmp.ne.s32.totalorder %s73, %s87
      %p89 = scmp.eq.s32.totalorder %s21, 0
      %p90 = por %p88, %p89
      %s92 = sadd.s32 %s91, 1
      %p95 = scmp.eq.s32.totalorder %s15, 1
      %p96 = scmp.ne.s32.totalorder %s91, %s93
      %p97 = scmp.eq.s32.totalorder %s15, 0
      %p98 = por %p96, %p97
      %p99 = scmp.ne.s32.totalorder %s91, %s93
      %p100 = scmp.eq.s32.totalorder %s20, 1
      %p101 = por %p99, %p100
      %p102 = scmp.ne.s32.totalorder %s93, %s94
      %p103 = scmp.eq.s32.totalorder %s20, 0
      %p104 = por %p102, %p103
      %p105 = scmp.ne.s32.totalorder %s93, %s94
      %p106 = scmp.eq.s32.totalorder %s21, 1
      %p107 = por %p105, %p106
      %p109 = scmp.ne.s32.totalorder %s94, %s108
      %p110 = scmp.eq.s32.totalorder %s21, 0
      %p111 = por %p109, %p110
      %s113 = sadd.s32 %s112, 1
      %p116 = scmp.eq.s32.totalorder %s15, 1
      %p117 = scmp.ne.s32.totalorder %s112, %s114
      %p118 = scmp.eq.s32.totalorder %s15, 0
      %p119 = por %p117, %p118
      %p120 = scmp.ne.s32.totalorder %s112, %s114
      %p121 = scmp.eq.s32.totalorder %s20, 1
      %p122 = por %p120, %p121
      %p123 = scmp.ne.s32.totalorder %s114, %s115
      %p124 = scmp.eq.s32.totalorder %s20, 0
      %p125 = por %p123, %p124
      %p126 = scmp.ne.s32.totalorder %s114, %s115
      %p127 = scmp.eq.s32.totalorder %s21, 1
      %p128 = por %p126, %p127
      %p130 = scmp.ne.s32.totalorder %s115, %s129
      %p131 = scmp.eq.s32.totalorder %s21, 0
      %p132 = por %p130, %p131
      %s133 = ssub.s32 %s15, %s22
      %p134 = scmp.eq.s32.totalorder %s133, 0
      %s136 = sadd.s32 %s135, 1
      %s137 = scalar_select %p134, %s135, %s136
      %p140 = pneg %p134
      %p141 = scmp.eq.s32.totalorder %s15, 1
      %p142 = por %p140, %p141
      %p143 = scmp.ne.s32.totalorder %s135, %s138
      %p144 = scmp.eq.s32.totalorder %s15, 0
      %p145 = por %p143, %p144
      %p146 = scmp.ne.s32.totalorder %s135, %s138
      %p147 = scmp.eq.s32.totalorder %s20, 1
      %p148 = por %p146, %p147
      %p149 = scmp.ne.s32.totalorder %s138, %s139
      %p150 = scmp.eq.s32.totalorder %s20, 0
      %p151 = por %p149, %p150
      %p152 = scmp.ne.s32.totalorder %s138, %s139
      %p153 = scmp.eq.s32.totalorder %s21, 1
      %p154 = por %p152, %p153
      %p156 = scmp.ne.s32.totalorder %s139, %s155
      %p157 = scmp.eq.s32.totalorder %s21, 0
      %p158 = por %p156, %p157
      %p159 = scmp.le.s32.totalorder 1, %s15
      %p160 = scmp.lt.s32.totalorder %s15, 3
      %p161 = pnand %p159, %p160
      %p162 = pneg %p161
      // Predicated region
      $region9: #{tpu_custom_call.1} parent=5 // pred_check
        _
      $region10: #{tpu_custom_call.1} parent=5 // pred_check_branch
        %164 = sbr.rel (%p161) target = $region12
      $region11: #{tpu_custom_call.1} parent=5 // pred_region
        %s165 = ssub.s32 %s15, 1
        // Predicated region
        $region13: #{tpu_custom_call.1} parent=11 // pred_check
          %p166 = pneg %p62
        $region14: #{tpu_custom_call.1} parent=11 // pred_check_branch
          %168 = sbr.rel (%p166) target = $region16
        $region15: #{tpu_custom_call.1} parent=11 // pred_region
          _
        $region16: #{tpu_custom_call.1} parent=11 // pred_fallthru
          _
        // Predicated region
        $region17: #{tpu_custom_call.1} parent=11 // pred_check
          %p169 = pneg %p83
        $region18: #{tpu_custom_call.1} parent=11 // pred_check_branch
          %171 = sbr.rel (%p169) target = $region20
        $region19: #{tpu_custom_call.1} parent=11 // pred_region
          %s173 = ssub.s32 3072, 3072
          %174 = vsyncadd [#allocation4], %s173
          %s175 = sshll.u32 [#allocation3], 4
          %s176 = int_to_ptr.vmem [resolvable:$true] %s175
          %181 = dma.hbm_to_vmem [thread:$0]  %s2, 3072, %s176, [#allocation4], 64, 64, 4
        $region20: #{tpu_custom_call.1} parent=11 // pred_fallthru
          _
        // Predicated region
        $region21: #{tpu_custom_call.1} parent=11 // pred_check
          %p182 = pneg %p104
        $region22: #{tpu_custom_call.1} parent=11 // pred_check_branch
          %184 = sbr.rel (%p182) target = $region24
        $region23: #{tpu_custom_call.1} parent=11 // pred_region
          _
        $region24: #{tpu_custom_call.1} parent=11 // pred_fallthru
          _
        // Predicated region
        $region25: #{tpu_custom_call.1} parent=11 // pred_check
          %p185 = pneg %p125
        $region26: #{tpu_custom_call.1} parent=11 // pred_check_branch
          %187 = sbr.rel (%p185) target = $region28
        $region27: #{tpu_custom_call.1} parent=11 // pred_region
          _
        $region28: #{tpu_custom_call.1} parent=11 // pred_fallthru
          _
      $region12: #{tpu_custom_call.1} parent=5 // pred_fallthru
        _
      %p188 = scmp.lt.s32.totalorder %s15, 2
      // Predicated region
      $region29: #{tpu_custom_call.1} parent=5 // pred_check
        %p189 = pneg %p188
      $region30: #{tpu_custom_call.1} parent=5 // pred_check_branch
        %191 = sbr.rel (%p189) target = $region32
      $region31: #{tpu_custom_call.1} parent=5 // pred_region
        // Predicated region
        $region33: #{tpu_custom_call.1} parent=31 // pred_check
          %p192 = pneg %p35
        $region34: #{tpu_custom_call.1} parent=31 // pred_check_branch
          %194 = sbr.rel (%p192) target = $region36
        $region35: #{tpu_custom_call.1} parent=31 // pred_region
          %p195 = scmp.lt.s32.totalorder %s15, 1
          %s196 = scalar_select %p195, %s15, 1
          %s197 = smul.addr %s196, 3
          %s198 = smul.addr %s197, 4
          %s199 = scalar_lea.vmem %s0, %s198
        $region36: #{tpu_custom_call.1} parent=31 // pred_fallthru
          _
      $region32: #{tpu_custom_call.1} parent=5 // pred_fallthru
        _
      %p200 = scmp.le.s32.totalorder 1, %s15
      %p201 = scmp.lt.s32.totalorder %s15, 3
      %p202 = pnand %p200, %p201
      %p203 = pneg %p202
      // Predicated region
      $region37: #{tpu_custom_call.1} parent=5 // pred_check
        _
      $region38: #{tpu_custom_call.1} parent=5 // pred_check_branch
        %205 = sbr.rel (%p202) target = $region40
      $region39: #{tpu_custom_call.1} parent=5 // pred_region
        %s206 = ssub.s32 %s15, 1
        // Predicated region
        $region41: #{tpu_custom_call.1} parent=39 // pred_check
          %p207 = pneg %p83
        $region42: #{tpu_custom_call.1} parent=39 // pred_check_branch
          %209 = sbr.rel (%p207) target = $region44
        $region43: #{tpu_custom_call.1} parent=39 // pred_region
          %210 = dma.done [#allocation4], 3072
        $region44: #{tpu_custom_call.1} parent=39 // pred_fallthru
          _
        %p211 = scmp.lt.s32.totalorder %s20, 1
        %s212 = scalar_select %p211, %s20, 1
        %s213 = smul.addr %s212, 3
        %s214 = smul.addr %s213, 4
        %s215 = scalar_lea.vmem %s0, %s214
        %p216 = pneg %p41
        %p217 = pneg %p38
        %p218 = pneg %p62
        %p219 = pneg %p59
        %p220 = pneg %p83
        %p221 = pneg %p80
        %p222 = pneg %p104
        %p223 = pneg %p101
        %p224 = pneg %p125
        %p225 = pneg %p122
        %p226 = pneg %p151
        %p227 = pneg %p148
        %s228 = sand.u32 %s138, 1
        %s229 = scalar_lea.sflag [#allocation5], %s228
        %s230 = sand.u32 %s138, 1
        %s231 = smul.addr %s230, 16
        %s232 = scalar_lea.vmem [#allocation6], %s231
        %p233 = scmp.lt.s32.totalorder %s20, 1
        %s234 = scalar_select %p233, %s20, 1
        %s235 = smul.addr %s234, 3
        %s236 = smul.addr %s235, 4
        %s237 = scalar_lea.vmem %s0, %s236
        %v239 = vld [vmem:[%s4] sm:$0x7]
        %v240 = vld [vmem:[%s237] sm:$0xf]
        %v241 = vld [vmem:[%s237 + $0x4] sm:$0xf]
        %v242 = vld [vmem:[%s1] sm:$0x3]
        %v243 = vld [vmem:[%s237 + $0x8] sm:$0x1]
        %s244 = scalar_lea.vmem %s1, 2
        %v245 = vld [vmem:[%s244] sm:$0x3]
        %v249 = vunpack.c.l.b16 %v240
        %v250 = vunpack.c.l.b16 %v241
        %v251 = vunpack.c.l.b16 %v243
        %v252 = vpack.c.b16 %v250, %v249
        %v253 = vpack.c.b16 %v251, %v251
        %vm254 = vsmask.f32 7424
        %v256 = vshrl.u32 %v252, 16
        %v258 = vshll.u32 %v252, 16
        %v260 = vrot.slane %v258, 1
        %v261 = vor.u32 %v256, %v260
        %v263 = vshll.u32 %v253, 16
        %v265 = vrot.slane %v263, 1
        %v266 = vsel %vm254, %v261, %v265
        %vm267 = vcmask 31744
        %v269 = vsel %vm267, %v266, 0
        %vm271 = vcmask 1041408
        %v273 = vsel %vm271, %v245, 0
        %275 = vmatprep.subr.bf16.mxu0 0
        %276 = vmatpush1.bf16.msra.mxu0 0
        %277 = vmatprep.subr.bf16.mxu0 0
        %278 = vmatpush1.bf16.msra.mxu0 0
        %279 = vmatprep.subr.bf16.mxu0 0
        %280 = vmatpush1.bf16.msra.mxu0 0
        %281 = vmatprep.subr.bf16.mxu0 0
        %282 = vmatpush1.bf16.msra.mxu0 0
        %283 = vmatprep.subr.bf16.mxu0 0
        %284 = vmatpush1.bf16.msra.mxu0 0
        %285 = vmatprep.subr.bf16.mxu0 0
        %286 = vmatpush1.bf16.msra.mxu0 0
        %287 = vmatprep.subr.bf16.mxu0 0
        %288 = vmatpush1.bf16.msra.mxu0 0
        %289 = vmatprep.subr.bf16.mxu0 0
        %290 = vmatpush1.bf16.msra.mxu0 %v273
        %291 = vmatprep.subr.bf16.mxu0 0
        %292 = vmatpush2.bf16.msra.mxu0 0
        %293 = vmatprep.subr.bf16.mxu0 0
        %294 = vmatpush2.bf16.msra.mxu0 0
        %295 = vmatprep.subr.bf16.mxu0 0
        %296 = vmatpush2.bf16.msra.mxu0 0
        %297 = vmatprep.subr.bf16.mxu0 0
        %298 = vmatpush2.bf16.msra.mxu0 0
        %299 = vmatprep.subr.bf16.mxu0 0
        %300 = vmatpush2.bf16.msra.mxu0 0
        %301 = vmatprep.subr.bf16.mxu0 0
        %302 = vmatpush2.bf16.msra.mxu0 0
        %303 = vmatprep.subr.bf16.mxu0 0
        %304 = vmatpush2.bf16.msra.mxu0 0
        %305 = vmatprep.subr.bf16.mxu0 0
        %306 = vmatpush2.bf16.msra.mxu0 0
        %307 = vmatprep.mubr.bf16.mxu0 0
        %308 = vmatmul.mubr.bf16.gmra.mxu0 %v269
        %v309 = vpop.f32.mrf.mxu0
        %v310 = vadd.f32 0.0, %v309
        %v311 = vpop.f32.mrf.mxu0
        %v312 = vpop.f32.mrf.mxu0
        %v313 = vadd.f32 0.0, %v312
        %v314 = vpop.f32.mrf.mxu0
        %315 = vdwg.mxu0
        %v316 = vsel %vm267, %v252, 0
        %v319 = vsel %vm271, %v242, 0
        %321 = vmatprep.subr.bf16.mxu0 0
        %322 = vmatpush1.bf16.msra.mxu0 0
        %323 = vmatprep.subr.bf16.mxu0 0
        %324 = vmatpush1.bf16.msra.mxu0 0
        %325 = vmatprep.subr.bf16.mxu0 0
        %326 = vmatpush1.bf16.msra.mxu0 0
        %327 = vmatprep.subr.bf16.mxu0 0
        %328 = vmatpush1.bf16.msra.mxu0 0
        %329 = vmatprep.subr.bf16.mxu0 0
        %330 = vmatpush1.bf16.msra.mxu0 0
        %331 = vmatprep.subr.bf16.mxu0 0
        %332 = vmatpush1.bf16.msra.mxu0 0
        %333 = vmatprep.subr.bf16.mxu0 0
        %334 = vmatpush1.bf16.msra.mxu0 0
        %335 = vmatprep.subr.bf16.mxu0 0
        %336 = vmatpush1.bf16.msra.mxu0 %v319
        %337 = vmatprep.subr.bf16.mxu0 0
        %338 = vmatpush2.bf16.msra.mxu0 0
        %339 = vmatprep.subr.bf16.mxu0 0
        %340 = vmatpush2.bf16.msra.mxu0 0
        %341 = vmatprep.subr.bf16.mxu0 0
        %342 = vmatpush2.bf16.msra.mxu0 0
        %343 = vmatprep.subr.bf16.mxu0 0
        %344 = vmatpush2.bf16.msra.mxu0 0
        %345 = vmatprep.subr.bf16.mxu0 0
        %346 = vmatpush2.bf16.msra.mxu0 0
        %347 = vmatprep.subr.bf16.mxu0 0
        %348 = vmatpush2.bf16.msra.mxu0 0
        %349 = vmatprep.subr.bf16.mxu0 0
        %350 = vmatpush2.bf16.msra.mxu0 0
        %351 = vmatprep.subr.bf16.mxu0 0
        %352 = vmatpush2.bf16.msra.mxu0 0
        %353 = vmatprep.mubr.bf16.mxu0 0
        %354 = vmatmul.mubr.bf16.gmra.mxu0 %v316
        %v355 = vpop.f32.mrf.mxu0
        %v356 = vadd.f32 %v310, %v355
        %v357 = vpop.f32.mrf.mxu0
        %v358 = vpop.f32.mrf.mxu0
        %v359 = vadd.f32 %v313, %v358
        %v360 = vpop.f32.mrf.mxu0
        %361 = vdwg.mxu0
        %v362 = vld [vmem:[%s237] sm:$0xe]
        %s363 = scalar_lea.vmem %s1, 4
        %v364 = vld [vmem:[%s363] sm:$0x3]
        %v366 = vunpack.c.l.b16 %v362
        %v367 = vpack.c.b16 %v250, %v366
        %vm368 = vcmask 1046528
        %v369 = vrot.slane %v367, 1
        %v370 = vrot.slane %v253, 1
        %v371 = vsel %vm368, %v369, %v370
        %v373 = vsel %vm267, %v371, 0
        %v376 = vsel %vm271, %v364, 0
        %378 = vmatprep.subr.bf16.mxu0 0
        %379 = vmatpush1.bf16.msra.mxu0 0
        %380 = vmatprep.subr.bf16.mxu0 0
        %381 = vmatpush1.bf16.msra.mxu0 0
        %382 = vmatprep.subr.bf16.mxu0 0
        %383 = vmatpush1.bf16.msra.mxu0 0
        %384 = vmatprep.subr.bf16.mxu0 0
        %385 = vmatpush1.bf16.msra.mxu0 0
        %386 = vmatprep.subr.bf16.mxu0 0
        %387 = vmatpush1.bf16.msra.mxu0 0
        %388 = vmatprep.subr.bf16.mxu0 0
        %389 = vmatpush1.bf16.msra.mxu0 0
        %390 = vmatprep.subr.bf16.mxu0 0
        %391 = vmatpush1.bf16.msra.mxu0 0
        %392 = vmatprep.subr.bf16.mxu0 0
        %393 = vmatpush1.bf16.msra.mxu0 %v376
        %394 = vmatprep.subr.bf16.mxu0 0
        %395 = vmatpush2.bf16.msra.mxu0 0
        %396 = vmatprep.subr.bf16.mxu0 0
        %397 = vmatpush2.bf16.msra.mxu0 0
        %398 = vmatprep.subr.bf16.mxu0 0
        %399 = vmatpush2.bf16.msra.mxu0 0
        %400 = vmatprep.subr.bf16.mxu0 0
        %401 = vmatpush2.bf16.msra.mxu0 0
        %402 = vmatprep.subr.bf16.mxu0 0
        %403 = vmatpush2.bf16.msra.mxu0 0
        %404 = vmatprep.subr.bf16.mxu0 0
        %405 = vmatpush2.bf16.msra.mxu0 0
        %406 = vmatprep.subr.bf16.mxu0 0
        %407 = vmatpush2.bf16.msra.mxu0 0
        %408 = vmatprep.subr.bf16.mxu0 0
        %409 = vmatpush2.bf16.msra.mxu0 0
        %410 = vmatprep.mubr.bf16.mxu0 0
        %411 = vmatmul.mubr.bf16.gmra.mxu0 %v373
        %v412 = vpop.f32.mrf.mxu0
        %v413 = vadd.f32 0.0, %v412
        %v414 = vpop.f32.mrf.mxu0
        %v415 = vpop.f32.mrf.mxu0
        %v416 = vadd.f32 0.0, %v415
        %v417 = vpop.f32.mrf.mxu0
        %418 = vdwg.mxu0
        %v419 = vadd.f32 %v356, %v413
        %v420 = vadd.f32 %v359, %v416
        %v421 = vlaneseq
        %v422 = vshrl.u32 %v421, 7
        %v423 = vsub.s32 0, %v422
        %v424 = vrot.slane %v239, %v423
        %v425 = vadd.f32 %v419, %v424
        %v426 = vadd.f32 %v420, %v424
        %v427 = vmax.f32 %v425, 0.0
        %v428 = vmax.f32 %v426, 0.0
        %v429 = vpack.c.bf16 %v428, %v427
        %vm430 = vcmask 1040384
        %vm431 = vsmask.f32 256
        %vm432 = vmand %vm430, %vm431
        %v433 = vld [vmem:[#allocation2] sm:$0x1]
        %v434 = vsel %vm432, 0, %v433
        %435 = vst [vmem:[#allocation2] sm:$0x1] %v434
        %v437 = vunpack.c.l.b16 %v429
        %v438 = vunpack.c.h.b16 %v429
        %v439 = vpack.c.b16 %v437, %v437
        %v440 = vpack.c.b16 %v438, %v438
        %vm441 = vsmask.f32 4368
        %vm442 = vmor %vm431, %vm441
        %v444 = vshrl.u32 %v439, 16
        %v446 = vrot.slane %v444, 7
        %v447 = vshll.u32 %v439, 16
        %v449 = vor.u32 %v446, %v447
        %v450 = vrot.slane %v446, 4
        %v452 = vshrl.u32 %v440, 16
        %v454 = vrot.slane %v452, 7
        %v455 = vshll.u32 %v440, 16
        %v457 = vor.u32 %v454, %v455
        %v458 = vsel %vm442, %v450, %v457
        %vm461 = vcmask 1043456
        %vm462 = vsmask.f32 7938
        %vm463 = vmand %vm461, %vm462
        %v464 = vld [vmem:[#allocation2] sm:$0xf]
        %v465 = vsel %vm463, %v449, %v464
        %466 = vst [vmem:[#allocation2] sm:$0xf] %v465
        %467 = vst [vmem:[#allocation2 + $0xc] sm:$0xf] %v458
        %470 = vst [vmem:[#allocation2 + $0x4] sm:$0xf] %v439
        %471 = vst [vmem:[#allocation2 + $0x10] sm:$0xf] %v440
        %vm472 = vcmask 1043459
        %vm473 = vsmask.f32 7950
        %vm474 = vmand %vm472, %vm473
        %v475 = vld [vmem:[#allocation2 + $0x14] sm:$0x8]
        %v476 = vsel %vm474, 0, %v475
        %477 = vst [vmem:[#allocation2 + $0x14] sm:$0x8] %v476
        %vm478 = vsmask.f32 3328
        %vm479 = vsmask.f32 7440
        %vm480 = vmor %vm478, %vm479
        %v481 = vrot.slane %v444, 4
        %v482 = vrot.slane %v447, 5
        %v483 = vor.u32 %v481, %v482
        %v484 = vrot.slane %v483, 4
        %v485 = vrot.slane %v455, 5
        %v486 = vsel %vm480, %v484, %v485
        %v487 = vrot.slane %v452, 4
        %v488 = vor.u32 %v487, %v485
        %v489 = vrot.slane %v488, 4
        %492 = vst [vmem:[#allocation2 + $0x8] sm:$0xf] %v486
        %vm493 = vmand %vm461, %vm478
        %v494 = vld [vmem:[#allocation2 + $0x14] sm:$0xf]
        %v495 = vsel %vm493, %v489, %v494
        %496 = vst [vmem:[#allocation2 + $0x14] sm:$0xf] %v495
        %v497 = vld [vmem:[#allocation2] sm:$0xff]
        %v498 = vld [vmem:[#allocation2 + $0x8] sm:$0xf]
        %v499 = vld [vmem:[#allocation2 + $0xc] sm:$0xff]
        %v500 = vld [vmem:[#allocation2 + $0x14] sm:$0xf]
        %v501 = vld [vmem:[#allocation3] sm:$0xf]
        %v502 = vld [vmem:[#allocation3 + $0x4] sm:$0xf]
        %v503 = vld [vmem:[#allocation3 + $0x8] sm:$0xf]
        %v504 = vld [vmem:[#allocation3 + $0xc] sm:$0xf]
        %v505 = vld [vmem:[#allocation3 + $0x10] sm:$0xf]
        %v506 = vld [vmem:[#allocation3 + $0x14] sm:$0xf]
        %v507 = vld [vmem:[#allocation3 + $0x18] sm:$0xf]
        %v508 = vld [vmem:[#allocation3 + $0x1c] sm:$0xf]
        %v509 = vld [vmem:[#allocation3 + $0x20] sm:$0xf]
        %v510 = vld [vmem:[#allocation3 + $0x24] sm:$0xf]
        %v511 = vld [vmem:[#allocation3 + $0x28] sm:$0xf]
        %v512 = vld [vmem:[#allocation3 + $0x2c] sm:$0xf]
        %v513 = vld [vmem:[#allocation3 + $0x30] sm:$0xf]
        %v514 = vld [vmem:[#allocation3 + $0x34] sm:$0xf]
        %v515 = vld [vmem:[#allocation3 + $0x38] sm:$0xf]
        %v516 = vld [vmem:[#allocation3 + $0x3c] sm:$0xf]
        %v517 = vld [vmem:[#allocation3 + $0x40] sm:$0xf]
        %v518 = vld [vmem:[#allocation3 + $0x44] sm:$0xf]
        %v519 = vld [vmem:[#allocation3 + $0x48] sm:$0xf]
        %v520 = vld [vmem:[#allocation3 + $0x4c] sm:$0xf]
        %v521 = vld [vmem:[#allocation3 + $0x50] sm:$0xf]
        %v522 = vld [vmem:[#allocation3 + $0x54] sm:$0xf]
        %v523 = vld [vmem:[#allocation3 + $0x58] sm:$0xf]
        %v524 = vld [vmem:[#allocation3 + $0x5c] sm:$0xf]
        %v525 = vld [vmem:[#allocation3 + $0x60] sm:$0xf]
        %v526 = vld [vmem:[#allocation3 + $0x64] sm:$0xf]
        %v527 = vld [vmem:[#allocation3 + $0x68] sm:$0xf]
        %v528 = vld [vmem:[#allocation3 + $0x6c] sm:$0xf]
        %v529 = vld [vmem:[#allocation3 + $0x70] sm:$0xf]
        %v530 = vld [vmem:[#allocation3 + $0x74] sm:$0xf]
        %v531 = vld [vmem:[#allocation3 + $0x78] sm:$0xf]
        %v532 = vld [vmem:[#allocation3 + $0x7c] sm:$0xf]
        %v533 = vld [vmem:[#allocation3 + $0x80] sm:$0xf]
        %v534 = vld [vmem:[#allocation3 + $0x84] sm:$0xf]
        %v535 = vld [vmem:[#allocation3 + $0x88] sm:$0xf]
        %v536 = vld [vmem:[#allocation3 + $0x8c] sm:$0xf]
        %v537 = vld [vmem:[#allocation3 + $0x90] sm:$0xf]
        %v538 = vld [vmem:[#allocation3 + $0x94] sm:$0xf]
        %v539 = vld [vmem:[#allocation3 + $0x98] sm:$0xf]
        %v540 = vld [vmem:[#allocation3 + $0x9c] sm:$0xf]
        %v541 = vld [vmem:[#allocation3 + $0xa0] sm:$0xf]
        %v542 = vld [vmem:[#allocation3 + $0xa4] sm:$0xf]
        %v543 = vld [vmem:[#allocation3 + $0xa8] sm:$0xf]
        %v544 = vld [vmem:[#allocation3 + $0xac] sm:$0xf]
        %v545 = vld [vmem:[#allocation3 + $0xb0] sm:$0xf]
        %v546 = vld [vmem:[#allocation3 + $0xb4] sm:$0xf]
        %v547 = vld [vmem:[#allocation3 + $0xb8] sm:$0xf]
        %v548 = vld [vmem:[#allocation3 + $0xbc] sm:$0xf]
        %v549 = vlaneseq
        %v550 = vshrl.u32 %v549, 7
        %v551 = vsub.s32 1, %v550
        %v552 = vrot.slane %v239, %v551
        %v557 = vunpack.c.l.b16 %v497
        %v558 = vunpack.c.h.b16 %v497
        %v559 = vunpack.c.l.b16 %v498
        %v560 = vunpack.c.l.b16 %v499
        %v561 = vunpack.c.h.b16 %v499
        %v562 = vunpack.c.l.b16 %v500
        %v563 = vpack.c.b16 %v560, %v557
        %v564 = vpack.c.b16 %v561, %v558
        %v565 = vpack.c.b16 %v562, %v559
        %v617 = vunpack.c.l.b16 %v501
        %v618 = vunpack.c.l.b16 %v502
        %v619 = vunpack.c.l.b16 %v503
        %v620 = vunpack.c.l.b16 %v504
        %v621 = vunpack.c.l.b16 %v505
        %v622 = vunpack.c.l.b16 %v506
        %v623 = vunpack.c.l.b16 %v507
        %v624 = vunpack.c.l.b16 %v508
        %v625 = vunpack.c.l.b16 %v509
        %v626 = vunpack.c.l.b16 %v510
        %v627 = vunpack.c.l.b16 %v511
        %v628 = vunpack.c.l.b16 %v512
        %v629 = vunpack.c.l.b16 %v513
        %v630 = vunpack.c.l.b16 %v514
        %v631 = vunpack.c.l.b16 %v515
        %v632 = vunpack.c.l.b16 %v516
        %v633 = vunpack.c.l.b16 %v517
        %v634 = vunpack.c.l.b16 %v518
        %v635 = vunpack.c.l.b16 %v519
        %v636 = vunpack.c.l.b16 %v520
        %v637 = vunpack.c.l.b16 %v521
        %v638 = vunpack.c.l.b16 %v522
        %v639 = vunpack.c.l.b16 %v523
        %v640 = vunpack.c.l.b16 %v524
        %v641 = vunpack.c.l.b16 %v525
        %v642 = vunpack.c.l.b16 %v526
        %v643 = vunpack.c.l.b16 %v527
        %v644 = vunpack.c.l.b16 %v528
        %v645 = vunpack.c.l.b16 %v529
        %v646 = vunpack.c.l.b16 %v530
        %v647 = vunpack.c.l.b16 %v531
        %v648 = vunpack.c.l.b16 %v532
        %v649 = vunpack.c.l.b16 %v533
        %v650 = vunpack.c.l.b16 %v534
        %v651 = vunpack.c.l.b16 %v535
        %v652 = vunpack.c.l.b16 %v536
        %v653 = vunpack.c.l.b16 %v537
        %v654 = vunpack.c.l.b16 %v538
        %v655 = vunpack.c.l.b16 %v539
        %v656 = vunpack.c.l.b16 %v540
        %v657 = vunpack.c.l.b16 %v541
        %v658 = vunpack.c.l.b16 %v542
        %v659 = vunpack.c.l.b16 %v543
        %v660 = vunpack.c.l.b16 %v544
        %v661 = vunpack.c.l.b16 %v545
        %v662 = vunpack.c.l.b16 %v546
        %v663 = vunpack.c.l.b16 %v547
        %v664 = vunpack.c.l.b16 %v548
        %v665 = vpack.c.b16 %v618, %v617
        %v666 = vpack.c.b16 %v620, %v619
        %v667 = vpack.c.b16 %v622, %v621
        %v668 = vpack.c.b16 %v624, %v623
        %v669 = vpack.c.b16 %v626, %v625
        %v670 = vpack.c.b16 %v628, %v627
        %v671 = vpack.c.b16 %v630, %v629
        %v672 = vpack.c.b16 %v632, %v631
        %v673 = vpack.c.b16 %v634, %v633
        %v674 = vpack.c.b16 %v636, %v635
        %v675 = vpack.c.b16 %v638, %v637
        %v676 = vpack.c.b16 %v640, %v639
        %v677 = vpack.c.b16 %v642, %v641
        %v678 = vpack.c.b16 %v644, %v643
        %v679 = vpack.c.b16 %v646, %v645
        %v680 = vpack.c.b16 %v648, %v647
        %v681 = vpack.c.b16 %v650, %v649
        %v682 = vpack.c.b16 %v652, %v651
        %v683 = vpack.c.b16 %v654, %v653
        %v684 = vpack.c.b16 %v656, %v655
        %v685 = vpack.c.b16 %v658, %v657
        %v686 = vpack.c.b16 %v660, %v659
        %v687 = vpack.c.b16 %v662, %v661
        %v688 = vpack.c.b16 %v664, %v663
        %713 = vmatprep.subr.bf16.mxu0 0
        %714 = vmatpush1.bf16.msra.mxu0 %v672
        %715 = vmatprep.subr.bf16.mxu0 0
        %716 = vmatpush1.bf16.msra.mxu0 %v671
        %717 = vmatprep.subr.bf16.mxu0 0
        %718 = vmatpush1.bf16.msra.mxu0 %v670
        %719 = vmatprep.subr.bf16.mxu0 0
        %720 = vmatpush1.bf16.msra.mxu0 %v669
        %721 = vmatprep.subr.bf16.mxu0 0
        %722 = vmatpush1.bf16.msra.mxu0 %v668
        %723 = vmatprep.subr.bf16.mxu0 0
        %724 = vmatpush1.bf16.msra.mxu0 %v667
        %725 = vmatprep.subr.bf16.mxu0 0
        %726 = vmatpush1.bf16.msra.mxu0 %v666
        %727 = vmatprep.subr.bf16.mxu0 0
        %728 = vmatpush1.bf16.msra.mxu0 %v665
        %729 = vmatprep.subr.bf16.mxu0 0
        %730 = vmatpush2.bf16.msra.mxu0 %v680
        %731 = vmatprep.subr.bf16.mxu0 0
        %732 = vmatpush2.bf16.msra.mxu0 %v679
        %733 = vmatprep.subr.bf16.mxu0 0
        %734 = vmatpush2.bf16.msra.mxu0 %v678
        %735 = vmatprep.subr.bf16.mxu0 0
        %736 = vmatpush2.bf16.msra.mxu0 %v677
        %737 = vmatprep.subr.bf16.mxu0 0
        %738 = vmatpush2.bf16.msra.mxu0 %v676
        %739 = vmatprep.subr.bf16.mxu0 0
        %740 = vmatpush2.bf16.msra.mxu0 %v675
        %741 = vmatprep.subr.bf16.mxu0 0
        %742 = vmatpush2.bf16.msra.mxu0 %v674
        %743 = vmatprep.subr.bf16.mxu0 0
        %744 = vmatpush2.bf16.msra.mxu0 %v673
        %745 = vmatprep.mubr.bf16.mxu0 %v564
        %746 = vmatmul.mubr.bf16.gmra.mxu0 %v563
        %v747 = vpop.f32.mrf.mxu0
        %v748 = vadd.f32 %v552, %v747
        %v749 = vpop.f32.mrf.mxu0
        %v750 = vpop.f32.mrf.mxu0
        %v751 = vadd.f32 %v552, %v750
        %v752 = vpop.f32.mrf.mxu0
        %753 = vdwg.mxu0
        %754 = vmatprep.subr.bf16.mxu0 0
        %755 = vmatpush1.bf16.msra.mxu0 %v688
        %756 = vmatprep.subr.bf16.mxu0 0
        %757 = vmatpush1.bf16.msra.mxu0 %v687
        %758 = vmatprep.subr.bf16.mxu0 0
        %759 = vmatpush1.bf16.msra.mxu0 %v686
        %760 = vmatprep.subr.bf16.mxu0 0
        %761 = vmatpush1.bf16.msra.mxu0 %v685
        %762 = vmatprep.subr.bf16.mxu0 0
        %763 = vmatpush1.bf16.msra.mxu0 %v684
        %764 = vmatprep.subr.bf16.mxu0 0
        %765 = vmatpush1.bf16.msra.mxu0 %v683
        %766 = vmatprep.subr.bf16.mxu0 0
        %767 = vmatpush1.bf16.msra.mxu0 %v682
        %768 = vmatprep.subr.bf16.mxu0 0
        %769 = vmatpush1.bf16.msra.mxu0 %v681
        %770 = vmatprep.subr.bf16.mxu0 0
        %771 = vmatpush2.bf16.msra.mxu0 0
        %772 = vmatprep.subr.bf16.mxu0 0
        %773 = vmatpush2.bf16.msra.mxu0 0
        %774 = vmatprep.subr.bf16.mxu0 0
        %775 = vmatpush2.bf16.msra.mxu0 0
        %776 = vmatprep.subr.bf16.mxu0 0
        %777 = vmatpush2.bf16.msra.mxu0 0
        %778 = vmatprep.subr.bf16.mxu0 0
        %779 = vmatpush2.bf16.msra.mxu0 0
        %780 = vmatprep.subr.bf16.mxu0 0
        %781 = vmatpush2.bf16.msra.mxu0 0
        %782 = vmatprep.subr.bf16.mxu0 0
        %783 = vmatpush2.bf16.msra.mxu0 0
        %784 = vmatprep.subr.bf16.mxu0 0
        %785 = vmatpush2.bf16.msra.mxu0 0
        %786 = vmatprep.mubr.bf16.mxu0 0
        %787 = vmatmul.mubr.bf16.gmra.mxu0 %v565
        %v788 = vpop.f32.mrf.mxu0
        %v789 = vadd.f32 %v748, %v788
        %v790 = vpop.f32.mrf.mxu0
        %v791 = vpop.f32.mrf.mxu0
        %v792 = vadd.f32 %v751, %v791
        %v793 = vpop.f32.mrf.mxu0
        %794 = vdwg.mxu0
        %v795 = vmax.f32 %v789, 0.0
        %v796 = vmax.f32 %v792, 0.0
        %v797 = vld [vmem:[%s237] sm:$0xf]
        %v798 = vld [vmem:[%s237 + $0x4] sm:$0xf]
        %v799 = vld [vmem:[%s237 + $0x8] sm:$0x1]
        %v800 = vld [vmem:[%s3] sm:$0x3]
        %v801 = vlaneseq
        %v802 = vshrl.u32 %v801, 7
        %v803 = vsub.s32 2, %v802
        %v804 = vrot.slane %v239, %v803
        %v808 = vunpack.c.l.b16 %v797
        %v809 = vunpack.c.l.b16 %v798
        %v810 = vunpack.c.l.b16 %v799
        %v811 = vpack.c.b16 %v809, %v808
        %v812 = vpack.c.b16 %v810, %v810
        %v814 = vshrl.u32 %v811, 16
        %v816 = vshll.u32 %v811, 16
        %v818 = vrot.slane %v816, 1
        %v819 = vor.u32 %v814, %v818
        %v821 = vshll.u32 %v812, 16
        %v823 = vrot.slane %v821, 1
        %v824 = vsel %vm254, %v819, %v823
        %v826 = vsel %vm267, %v824, 0
        %v829 = vsel %vm271, %v800, 0
        %831 = vmatprep.subr.bf16.mxu0 0
        %832 = vmatpush1.bf16.msra.mxu0 0
        %833 = vmatprep.subr.bf16.mxu0 0
        %834 = vmatpush1.bf16.msra.mxu0 0
        %835 = vmatprep.subr.bf16.mxu0 0
        %836 = vmatpush1.bf16.msra.mxu0 0
        %837 = vmatprep.subr.bf16.mxu0 0
        %838 = vmatpush1.bf16.msra.mxu0 0
        %839 = vmatprep.subr.bf16.mxu0 0
        %840 = vmatpush1.bf16.msra.mxu0 0
        %841 = vmatprep.subr.bf16.mxu0 0
        %842 = vmatpush1.bf16.msra.mxu0 0
        %843 = vmatprep.subr.bf16.mxu0 0
        %844 = vmatpush1.bf16.msra.mxu0 0
        %845 = vmatprep.subr.bf16.mxu0 0
        %846 = vmatpush1.bf16.msra.mxu0 %v829
        %847 = vmatprep.subr.bf16.mxu0 0
        %848 = vmatpush2.bf16.msra.mxu0 0
        %849 = vmatprep.subr.bf16.mxu0 0
        %850 = vmatpush2.bf16.msra.mxu0 0
        %851 = vmatprep.subr.bf16.mxu0 0
        %852 = vmatpush2.bf16.msra.mxu0 0
        %853 = vmatprep.subr.bf16.mxu0 0
        %854 = vmatpush2.bf16.msra.mxu0 0
        %855 = vmatprep.subr.bf16.mxu0 0
        %856 = vmatpush2.bf16.msra.mxu0 0
        %857 = vmatprep.subr.bf16.mxu0 0
        %858 = vmatpush2.bf16.msra.mxu0 0
        %859 = vmatprep.subr.bf16.mxu0 0
        %860 = vmatpush2.bf16.msra.mxu0 0
        %861 = vmatprep.subr.bf16.mxu0 0
        %862 = vmatpush2.bf16.msra.mxu0 0
        %863 = vmatprep.mubr.bf16.mxu0 0
        %864 = vmatmul.mubr.bf16.gmra.mxu0 %v826
        %v865 = vpop.f32.mrf.mxu0
        %v866 = vadd.f32 %v804, %v865
        %v867 = vpop.f32.mrf.mxu0
        %v868 = vpop.f32.mrf.mxu0
        %v869 = vadd.f32 %v804, %v868
        %v870 = vpop.f32.mrf.mxu0
        %871 = vdwg.mxu0
        %v872 = vadd.f32 %v795, %v866
        %v873 = vadd.f32 %v796, %v869
        %v874 = vmax.f32 %v872, 0.0
        %v875 = vmax.f32 %v873, 0.0
        %876 = vst [vmem:[%s232] sm:$0xff] %v874
        %877 = vst [vmem:[%s232 + $0x8] sm:$0xff] %v875
        %s878 = sand.u32 %s138, 1
        %s879 = scalar_lea.sflag [#allocation5], %s878
        %s880 = sand.u32 %s138, 1
        %s881 = smul.addr %s880, 16
        %s882 = scalar_lea.vmem [#allocation6], %s881
        // Predicated region
        $region45: #{tpu_custom_call.1} parent=39 // pred_check
          %p883 = pneg %p148
        $region46: #{tpu_custom_call.1} parent=39 // pred_check_branch
          %885 = sbr.rel (%p883) target = $region48
        $region47: #{tpu_custom_call.1} parent=39 // pred_region
          %s887 = ssub.s32 256, 256
          %888 = vsyncadd %s879, %s887
          %s889 = smul.addr %s20, 2
          %s890 = smul.addr %s889, 128
          %s891 = scalar_lea.hbm %s5, %s890
          %s892 = sshll.u32 %s882, 4
          %s893 = int_to_ptr.vmem [resolvable:$true] %s892
          %898 = dma.vmem_to_hbm [thread:$0]  %s893, 256, %s891, %s879, 128, 128, 8
        $region48: #{tpu_custom_call.1} parent=39 // pred_fallthru
          _
      $region40: #{tpu_custom_call.1} parent=5 // pred_fallthru
        _
      %p899 = scmp.le.s32.totalorder 2, %s15
      // Predicated region
      $region49: #{tpu_custom_call.1} parent=5 // pred_check
        %p900 = pneg %p899
      $region50: #{tpu_custom_call.1} parent=5 // pred_check_branch
        %902 = sbr.rel (%p900) target = $region52
      $region51: #{tpu_custom_call.1} parent=5 // pred_region
        %s903 = ssub.s32 %s15, 2
        // Predicated region
        $region53: #{tpu_custom_call.1} parent=51 // pred_check
          %p904 = pneg %p154
        $region54: #{tpu_custom_call.1} parent=51 // pred_check_branch
          %906 = sbr.rel (%p904) target = $region56
        $region55: #{tpu_custom_call.1} parent=51 // pred_region
          %s907 = sand.u32 %s139, 1
          %s908 = scalar_lea.sflag [#allocation5], %s907
          %s909 = sand.u32 %s139, 1
          %s910 = smul.addr %s909, 16
          %s911 = scalar_lea.vmem [#allocation6], %s910
          %912 = dma.done %s908, 256
        $region56: #{tpu_custom_call.1} parent=51 // pred_fallthru
          _
      $region52: #{tpu_custom_call.1} parent=5 // pred_fallthru
        _
    $region6: #{tpu_custom_call.1} parent=1 // loop_footer
      %s19 = sadd.s32 1, %s15
    $region7: #{tpu_custom_call.1} parent=1 // loop_footer_branch
      %14 = sbr.rel target = $region3
    $region8: #{tpu_custom_call.1} parent=1 // loop_exit
      _
    %913 = vsyncpa [#allocation4], 1
    %s914 = scalar_lea.sflag [#allocation4], 1
    %915 = vsyncpa %s914, 1
    %916 = vsyncpa [#allocation5], 1
    %s917 = scalar_lea.sflag [#allocation5], 1
    %918 = vsyncpa %s917, 1

</llo_original>
